<compile_context>
chip_gen: v7x
topology: tpu7x:2x2x1
jax: 0.10.0
libtpu: 0.0.40
codegen_flags: <defaults>
</compile_context>

<pallas_src>
import jax
import jax.numpy as jnp
from jax import lax
from jax.experimental import pallas as pl
from jax.experimental.pallas import tpu as pltpu

EPS = 1e-5
# ~2 MiB of f32 per block: large enough to sit near the HBM roofline, small
# enough that 2x(in block + out block) fits every generation's default
# scoped-VMEM budget without raising vmem_limit_bytes.
_TARGET_BLOCK_ELEMS = (2 * 1024 * 1024) // 4


def _stats_kernel(x_ref, sum_ref, sumsq_ref):
    """Per-row (row = one (n, c) pair) sum and sum-of-squares.

    Grid = (row_tile, l_tile). The l axis (last, "arbitrary") is a reduction:
    the (tile_r, 1) output blocks keep the same block index across it, so they
    stay resident in VMEM and act as accumulators.
    """
    t = pl.program_id(1)

    @pl.when(t == 0)
    def _init():
        sum_ref[...] = jnp.zeros_like(sum_ref)
        sumsq_ref[...] = jnp.zeros_like(sumsq_ref)

    x = x_ref[...].astype(jnp.float32)
    sum_ref[...] += jnp.sum(x, axis=-1, keepdims=True)
    sumsq_ref[...] += jnp.sum(x * x, axis=-1, keepdims=True)


def _normalize_kernel(x_ref, scale_ref, shift_ref, o_ref):
    """y = x * scale + shift with per-row precomputed (tile_r, 1) scale/shift."""
    x = x_ref[...].astype(jnp.float32)
    o_ref[...] = (x * scale_ref[...] + shift_ref[...]).astype(o_ref.dtype)


def _pick_tile(total, align, target):
    """Largest multiple of `align` that divides `total` and is <= target.

    Falls back to the full extent if `total` has no such divisor (avoids any
    padding / masking; for pathological huge prime-ish extents this may give an
    oversized block, which is acceptable here).
    """
    if total <= target:
        return total
    t = (target // align) * align
    while t >= align:
        if total % t == 0:
            return t
        t -= align
    return total


def batchnorm4d(x, gamma, beta):
    """x: (N, C, *spatial) float array. gamma, beta: (C,)."""
    orig_shape = x.shape
    N, C = orig_shape[0], orig_shape[1]
    L = 1
    for s in orig_shape[2:]:
        L *= s
    R = N * C          # rows of the 2-D view; row r = (n, c) with r = n*C + c
    M = N * L          # elements per channel (normalization count)

    # Free reshape of a contiguous array -- no transpose, no pad, no extra
    # HBM traffic.
    x2d = x.reshape(R, L)

    tile_r = _pick_tile(R, 8, 512)
    max_l = max(128, (_TARGET_BLOCK_ELEMS // max(tile_r, 1)) // 128 * 128)
    tile_l = _pick_tile(L, 128, max_l)
    num_r = R // tile_r
    num_l = L // tile_l

    # ---------------- pass 1: per-row sum / sum-of-squares -----------------
    row_sum, row_sumsq = pl.pallas_call(
        _stats_kernel,
        out_shape=(
            jax.ShapeDtypeStruct((R, 1), jnp.float32),
            jax.ShapeDtypeStruct((R, 1), jnp.float32),
        ),
        grid_spec=pltpu.PrefetchScalarGridSpec(
            num_scalar_prefetch=0,
            grid=(num_r, num_l),  # reduction axis (l) last
            in_specs=[pl.BlockSpec((tile_r, tile_l), lambda r, t: (r, t))],
            out_specs=(
                pl.BlockSpec((tile_r, 1), lambda r, t: (r, 0)),
                pl.BlockSpec((tile_r, 1), lambda r, t: (r, 0)),
            ),
        ),
        compiler_params=pltpu.CompilerParams(
            dimension_semantics=("parallel", "arbitrary"),
        ),
    )(x2d)

    # ------------- tiny per-channel combine + affine fold (JAX) ------------
    # O(N*C) work: combine per-row partials into per-channel stats, fold the
    # affine params so the normalize kernel is a single FMA per element.
    ch_sum = jnp.sum(row_sum.reshape(N, C), axis=0)
    ch_sumsq = jnp.sum(row_sumsq.reshape(N, C), axis=0)
    mean = ch_sum / M
    var = jnp.maximum(ch_sumsq / M - mean * mean, 0.0)  # biased var, clamped
    scale = gamma.astype(jnp.float32) * lax.rsqrt(var + EPS)   # (C,)
    shift = beta.astype(jnp.float32) - mean * scale            # (C,)
    scale_rows = jnp.broadcast_to(scale[None, :], (N, C)).reshape(R, 1)
    shift_rows = jnp.broadcast_to(shift[None, :], (N, C)).reshape(R, 1)

    # ---------------- pass 2: y = x * scale + shift -------------------------
    out2d = pl.pallas_call(
        _normalize_kernel,
        out_shape=jax.ShapeDtypeStruct((R, L), x.dtype),
        grid_spec=pltpu.PrefetchScalarGridSpec(
            num_scalar_prefetch=0,
            grid=(num_r, num_l),
            in_specs=[
                pl.BlockSpec((tile_r, tile_l), lambda r, t: (r, t)),
                pl.BlockSpec((tile_r, 1), lambda r, t: (r, 0)),
                pl.BlockSpec((tile_r, 1), lambda r, t: (r, 0)),
            ],
            out_specs=pl.BlockSpec((tile_r, tile_l), lambda r, t: (r, t)),
        ),
        compiler_params=pltpu.CompilerParams(
            dimension_semantics=("parallel", "parallel"),  # megacore-friendly
        ),
    )(x2d, scale_rows, shift_rows)

    return out2d.reshape(orig_shape)


def _reference(x, gamma, beta):
    """Pure-JAX reference matching PyTorch BatchNorm1d training-mode forward."""
    orig_shape = x.shape
    N, C = orig_shape[0], orig_shape[1]
    xr = x.reshape(N, C, -1).astype(jnp.float32)
    mean = jnp.mean(xr, axis=(0, 2), keepdims=True)
    var = jnp.mean((xr - mean) ** 2, axis=(0, 2), keepdims=True)  # biased
    y = (xr - mean) / jnp.sqrt(var + EPS)
    y = y * gamma.reshape(1, C, 1) + beta.reshape(1, C, 1)
    return y.reshape(orig_shape).astype(x.dtype)


if __name__ == "__main__":
    key = jax.random.PRNGKey(0)
    kx, kg, kb = jax.random.split(key, 3)

    # "4d" input: (batch, channels, D1, D2, D3, D4)
    N, C = 2, 4
    spatial = (4, 4, 4, 4)
    x = jax.random.normal(kx, (N, C) + spatial, dtype=jnp.float32)

    # PyTorch BatchNorm1d default init is weight=1, bias=0; perturb
    # deterministically so the affine path is exercised.
    gamma = jnp.ones((C,), jnp.float32) + 0.1 * jax.random.normal(kg, (C,))
    beta = 0.1 * jax.random.normal(kb, (C,))

    # TODO(synk): running_mean / running_var buffer updates (inference-mode
    # stat tracking) are side effects of nn.BatchNorm1d and are not produced.
    out = batchnorm4d(x, gamma, beta)
    out = jax.block_until_ready(out)

    ref = _reference(x, gamma, beta)
    assert out.shape == x.shape and out.dtype == x.dtype
    assert jnp.allclose(out, ref, atol=1e-4, rtol=1e-4), (
        f"max abs err {jnp.max(jnp.abs(out - ref))}"
    )
    print("KERNEL_OK")
</pallas_src>

<mosaic_0001>
module attributes {stable_mosaic.version = 11 : i64} {
  func.func @_stats_kernel(%arg0: i32, %arg1: i32, %arg2: memref<8x256xf32, #tpu.memory_space<vmem>>, %arg3: memref<8x1xf32, #tpu.memory_space<vmem>>, %arg4: memref<8x1xf32, #tpu.memory_space<vmem>>) attributes {dimension_semantics = [#tpu.dimension_semantics<parallel>, #tpu.dimension_semantics<arbitrary>], iteration_bounds = array<i64: 1, 1>, scalar_prefetch = 0 : i64, scratch_operands = 0 : i64, tpu.core_type = #tpu.core_type<tc>, window_params = [{transform_indices = @transform_0, window_bounds = array<i64: 8, 256>}, {transform_indices = @transform_1, window_bounds = array<i64: 8, 1>}, {transform_indices = @transform_2, window_bounds = array<i64: 8, 1>}]} {
    %c0_i32 = arith.constant 0 : i32
    %0 = arith.cmpi eq, %arg1, %c0_i32 : i32
    %1 = arith.extui %0 : i1 to i32
    %c0_i32_0 = arith.constant 0 : i32
    %2 = arith.cmpi ne, %1, %c0_i32_0 : i32
    scf.if %2 {
      %cst_11 = arith.constant 0.000000e+00 : f32
      %15 = vector.broadcast %cst_11 : f32 to vector<8x1xf32>
      %c0_12 = arith.constant 0 : index
      %c0_13 = arith.constant 0 : index
      %16 = vector.load %arg3[%c0_12, %c0_13] : memref<8x1xf32, #tpu.memory_space<vmem>>, vector<8x1xf32>
      tpu.vector_store %arg3[%c0_12, %c0_13], %15 {strides = array<i32>} : memref<8x1xf32, #tpu.memory_space<vmem>>, vector<8x1xf32>,
      %cst_14 = arith.constant 0.000000e+00 : f32
      %17 = vector.broadcast %cst_14 : f32 to vector<8x1xf32>
      %c0_15 = arith.constant 0 : index
      %c0_16 = arith.constant 0 : index
      %18 = vector.load %arg4[%c0_15, %c0_16] : memref<8x1xf32, #tpu.memory_space<vmem>>, vector<8x1xf32>
      tpu.vector_store %arg4[%c0_15, %c0_16], %17 {strides = array<i32>} : memref<8x1xf32, #tpu.memory_space<vmem>>, vector<8x1xf32>,
    } else {
    }
    %c0 = arith.constant 0 : index
    %c0_1 = arith.constant 0 : index
    %3 = vector.load %arg2[%c0, %c0_1] : memref<8x256xf32, #tpu.memory_space<vmem>>, vector<8x256xf32>
    %c0_2 = arith.constant 0 : index
    %c0_3 = arith.constant 0 : index
    %4 = vector.load %arg3[%c0_2, %c0_3] : memref<8x1xf32, #tpu.memory_space<vmem>>, vector<8x1xf32>
    %cst = arith.constant dense<0.000000e+00> : vector<8xf32>
    %5 = vector.multi_reduction <add>, %3, %cst [1] : vector<8x256xf32> to vector<8xf32>
    %6 = vector.shape_cast %5 : vector<8xf32> to vector<8x1xf32>
    %7 = arith.addf %4, %6 : vector<8x1xf32>
    %c0_4 = arith.constant 0 : index
    %c0_5 = arith.constant 0 : index
    %8 = vector.load %arg3[%c0_4, %c0_5] : memref<8x1xf32, #tpu.memory_space<vmem>>, vector<8x1xf32>
    tpu.vector_store %arg3[%c0_4, %c0_5], %7 {strides = array<i32>} : memref<8x1xf32, #tpu.memory_space<vmem>>, vector<8x1xf32>,
    %c0_6 = arith.constant 0 : index
    %c0_7 = arith.constant 0 : index
    %9 = vector.load %arg4[%c0_6, %c0_7] : memref<8x1xf32, #tpu.memory_space<vmem>>, vector<8x1xf32>
    %10 = arith.mulf %3, %3 : vector<8x256xf32>
    %cst_8 = arith.constant dense<0.000000e+00> : vector<8xf32>
    %11 = vector.multi_reduction <add>, %10, %cst_8 [1] : vector<8x256xf32> to vector<8xf32>
    %12 = vector.shape_cast %11 : vector<8xf32> to vector<8x1xf32>
    %13 = arith.addf %9, %12 : vector<8x1xf32>
    %c0_9 = arith.constant 0 : index
    %c0_10 = arith.constant 0 : index
    %14 = vector.load %arg4[%c0_9, %c0_10] : memref<8x1xf32, #tpu.memory_space<vmem>>, vector<8x1xf32>
    tpu.vector_store %arg4[%c0_9, %c0_10], %13 {strides = array<i32>} : memref<8x1xf32, #tpu.memory_space<vmem>>, vector<8x1xf32>,
    return
  }
  func.func @transform_0(%arg0: i32, %arg1: i32) -> (i32, i32) {
    %c0_i32 = arith.constant 0 : i32
    return %arg0, %arg1 : i32, i32
  }
  func.func @transform_1(%arg0: i32, %arg1: i32) -> (i32, i32) {
    %c0_i32 = arith.constant 0 : i32
    %c0_i32_0 = arith.constant 0 : i32
    return %arg0, %c0_i32 : i32, i32
  }
  func.func @transform_2(%arg0: i32, %arg1: i32) -> (i32, i32) {
    %c0_i32 = arith.constant 0 : i32
    %c0_i32_0 = arith.constant 0 : i32
    return %arg0, %c0_i32 : i32, i32
  }
}

</mosaic_0001>

<llo_original>
// kernel: tpu_custom_call.1
$region0: #{tpu_custom_call.1}
  #allocation0 [shape = 'u32[]', space=smem, size = 0x4, offset = 0x4, fixed_abs, tag = 'smem constant byte address 0x4 - core index']
  #allocation1 [shape = 'u32[144,128]{1,0:T(1,128)}', space=vmem, size = 0x12000, scoped, tag = 'internal scratch']
  %s0 = inlined_call_operand.hbm [shape: f32[8,256], index: 0, kind: input, shape index: {}]
  %s1 = inlined_call_operand.vmem [shape: f32[8,1], index: 1, kind: output, shape index: {0}]
  %s2 = inlined_call_operand.vmem [shape: f32[8,1], index: 2, kind: output, shape index: {1}]
  %3 = xla_tuple %s1, %s2
  %s4 = sld [smem:[#allocation0]]
  $region30: #{tpu_custom_call.1} parent=0
    _
  %s6 = ssub.s32 1, %s4
  %s7 = scalar_select 0, %s6, %s4
  $region1: #{tpu_custom_call.1} parent=0
    #allocation2 [shape = 'u8[8192]{0}', space=vmem, size = 0x2000, scoped, tag = 'input window, operand 0, single buffered']
    #allocation3 [shape = 's32[1]{0}', space=sflag, size = 0x4, scoped, tag = 'scoped memory for tpu_custom_call.1']
    %8 = vsyncpa [#allocation3], 0
    // Predicated region
    $region2: #{tpu_custom_call.1} parent=1 // pred_check
      _
    $region3: #{tpu_custom_call.1} parent=1 // pred_check_branch
      %10 = sbr.rel (0) target = $region5
    $region4: #{tpu_custom_call.1} parent=1 // pred_region
      %s12 = ssub.s32 256, 256
      %13 = vsyncadd [#allocation3], %s12
      %s15 = sshll.u32 [#allocation2], 4
      %s16 = int_to_ptr.vmem [resolvable:$true] %s15
      %18 = dma.hbm_to_vmem [thread:$0]  %s0, 256, %s16, [#allocation3]
    $region5: #{tpu_custom_call.1} parent=1 // pred_fallthru
      _
    // Predicated region
    $region6: #{tpu_custom_call.1} parent=1 // pred_check
      _
    $region7: #{tpu_custom_call.1} parent=1 // pred_check_branch
      %20 = sbr.rel (0) target = $region9
    $region8: #{tpu_custom_call.1} parent=1 // pred_region
      %21 = dma.done [#allocation3], 256
    $region9: #{tpu_custom_call.1} parent=1 // pred_fallthru
      _
    %p22 = scmp.eq.s32.totalorder 0, 0
    // Predicated region
    $region10: #{tpu_custom_call.1} parent=1 // pred_check
      %p23 = pneg %p22
    $region11: #{tpu_custom_call.1} parent=1 // pred_check_branch
      %25 = sbr.rel (%p23) target = $region13
    $region12: #{tpu_custom_call.1} parent=1 // pred_region
      %vm26 = vcmask 7168
      %27 = vst.msk [vmem:[%s1] sm:$0xff] %vm26, 0.0
      %28 = vst.msk [vmem:[%s2] sm:$0xff] %vm26, 0.0
    $region13: #{tpu_custom_call.1} parent=1 // pred_fallthru
      _
    %v29 = vld [vmem:[#allocation2] sm:$0xff]
    %v30 = vld [vmem:[#allocation2 + $0x8] sm:$0xff]
    %v31 = vld [vmem:[%s1] sm:$0xff]
    %v32 = vadd.f32 %v29, %v30
    %33 = vadd.xlane.f32.xlu0 %v32
    %v34 = vpop.xlane.xlu0 %33
    %v35 = vadd.f32 %v31, %v34
    %vm36 = vcmask 7168
    %37 = vst.msk [vmem:[%s1] sm:$0xff] %vm36, %v35
    %v38 = vld [vmem:[%s2] sm:$0xff]
    %v39 = vmul.f32 %v29, %v29
    %v40 = vmul.f32 %v30, %v30
    %v41 = vadd.f32 %v39, %v40
    %42 = vadd.xlane.f32.xlu0 %v41
    %v43 = vpop.xlane.xlu0 %42
    %v44 = vadd.f32 %v38, %v43
    %45 = vst.msk [vmem:[%s2] sm:$0xff] %vm36, %v44
    // Predicated region
    $region14: #{tpu_custom_call.1} parent=1 // pred_check
      _
    $region15: #{tpu_custom_call.1} parent=1 // pred_check_branch
      %47 = sbr.rel (0) target = $region17
    $region16: #{tpu_custom_call.1} parent=1 // pred_region
      _
    $region17: #{tpu_custom_call.1} parent=1 // pred_fallthru
      _
    // Predicated region
    $region18: #{tpu_custom_call.1} parent=1 // pred_check
      _
    $region19: #{tpu_custom_call.1} parent=1 // pred_check_branch
      %49 = sbr.rel (0) target = $region21
    $region20: #{tpu_custom_call.1} parent=1 // pred_region
      _
    $region21: #{tpu_custom_call.1} parent=1 // pred_fallthru
      _
    // Predicated region
    $region22: #{tpu_custom_call.1} parent=1 // pred_check
      _
    $region23: #{tpu_custom_call.1} parent=1 // pred_check_branch
      %51 = sbr.rel (0) target = $region25
    $region24: #{tpu_custom_call.1} parent=1 // pred_region
      _
    $region25: #{tpu_custom_call.1} parent=1 // pred_fallthru
      _
    // Predicated region
    $region26: #{tpu_custom_call.1} parent=1 // pred_check
      _
    $region27: #{tpu_custom_call.1} parent=1 // pred_check_branch
      %53 = sbr.rel (0) target = $region29
    $region28: #{tpu_custom_call.1} parent=1 // pred_region
      _
    $region29: #{tpu_custom_call.1} parent=1 // pred_fallthru
      _
    %54 = vsyncpa [#allocation3], 1

</llo_original>
